<compile_context>
chip_gen: v7x
topology: tpu7x:2x2x1
jax: 0.10.0
libtpu: 0.0.40
codegen_flags: <defaults>
</compile_context>

<pallas_src>
import functools

import jax
import jax.numpy as jnp
from jax.experimental import pallas as pl
from jax.experimental.pallas import tpu as pltpu

LOG_SIG_MIN = -20.0
LOG_SIG_MAX = 2.0
LANE = 128


def _round_up(x, m):
    return ((x + m - 1) // m) * m


# -----------------------------------------------------------------------------
# Kernel
# -----------------------------------------------------------------------------
def sac_actor_kernel(x_ref, w1t_ref, w2t_ref, wht_ref, b_ref, out_ref):
    # x_ref  : (input_dim, Bt) bf16   -- batch on the lane axis
    # w1t_ref: (L, input_dim)  bf16
    # w2t_ref: (L, L)          bf16
    # wht_ref: (HO, L)         bf16   rows [0,out_dim)=mean, [out_dim,2*out_dim)=log_std
    # b_ref  : (L, 8)          f32    col0=b1, col1=b2, col2=bh, col3=lo, col4=hi
    # out_ref: (HO, Bt)        f32
    ho = out_ref.shape[0]

    b = b_ref[...]
    b1 = b[:, 0:1]                      # (L, 1) broadcast over lanes
    b2 = b[:, 1:2]
    bh = b[:ho, 2:3]                    # (HO, 1)
    lo = b[:ho, 3:4]
    hi = b[:ho, 4:5]

    x = x_ref[...]                      # already bf16

    # layer 1: relu(W1^T @ x^T + b1)   (f32 accumulate, f32 elementwise)
    h1 = jnp.dot(w1t_ref[...], x, preferred_element_type=jnp.float32) + b1
    h1 = jnp.maximum(h1, 0.0)

    # layer 2: relu(W2^T @ h1 + b2)
    h2 = jnp.dot(w2t_ref[...], h1.astype(jnp.bfloat16),
                 preferred_element_type=jnp.float32) + b2
    h2 = jnp.maximum(h2, 0.0)

    # fused heads: rows [0,out_dim) = mean, [out_dim, 2*out_dim) = log_std.
    head = jnp.dot(wht_ref[...], h2.astype(jnp.bfloat16),
                   preferred_element_type=jnp.float32) + bh

    # per-row clamp: mean rows have lo=-inf/hi=+inf (pass-through),
    # log_std (+padding) rows have lo=-20/hi=2.
    out_ref[...] = jnp.minimum(jnp.maximum(head, lo), hi).astype(out_ref.dtype)


# -----------------------------------------------------------------------------
# Wrapper
# -----------------------------------------------------------------------------
def soft_actor_net_forward(state, w1t, w2t, wht, b_packed, *, out_dim, tile_b=2048):
    """state: [B, input_dim] f32.  Padded/fused/pre-transposed params from
    prepare_params().  Returns (mean, log_std), each [B, out_dim] f32."""
    B, input_dim = state.shape
    L = w2t.shape[0]
    HO = wht.shape[0]
    assert w1t.shape == (L, input_dim)
    assert 2 * out_dim <= HO <= L

    use_grid = B > tile_b
    if use_grid:
        n_tiles = pl.cdiv(B, tile_b)
        if n_tiles > 1 and n_tiles % 2 == 1:
            n_tiles += 1                      # even step count -> v7x TCs split evenly
        B_p = n_tiles * tile_b
    else:
        B_p = _round_up(max(B, LANE), LANE)   # lane-dense small-batch slab

    if B_p != B:
        state = jnp.pad(state, ((0, B_p - B), (0, 0)))
    # bf16 at the boundary (halves input DMA); transpose so batch sits on lanes.
    x_t = state.astype(jnp.bfloat16).T        # (input_dim, B_p)

    flops = 2 * B_p * (input_dim * L + L * L + L * HO)
    bytes_accessed = (x_t.size * 2 + w1t.size * 2 + w2t.size * 2
                      + wht.size * 2 + b_packed.size * 4 + HO * B_p * 4)
    cost = pl.CostEstimate(flops=flops, transcendentals=0,
                           bytes_accessed=bytes_accessed)

    if use_grid:
        out = pl.pallas_call(
            sac_actor_kernel,
            out_shape=jax.ShapeDtypeStruct((HO, B_p), jnp.float32),
            grid=(B_p // tile_b,),
            in_specs=[
                pl.BlockSpec((input_dim, tile_b), lambda i: (0, i)),
                pl.BlockSpec((L, input_dim), lambda i: (0, 0)),
                pl.BlockSpec((L, L), lambda i: (0, 0)),
                pl.BlockSpec((HO, L), lambda i: (0, 0)),
                pl.BlockSpec((L, 8), lambda i: (0, 0)),
            ],
            out_specs=pl.BlockSpec((HO, tile_b), lambda i: (0, i)),
            compiler_params=pltpu.CompilerParams(
                dimension_semantics=("parallel",)),
            cost_estimate=cost,
        )(x_t, w1t, w2t, wht, b_packed)
    else:
        # Small batch: single grid-less invocation, everything resident in VMEM.
        vmem = pl.BlockSpec(memory_space=pltpu.MemorySpace.VMEM)
        out = pl.pallas_call(
            sac_actor_kernel,
            out_shape=jax.ShapeDtypeStruct((HO, B_p), jnp.float32),
            in_specs=[vmem] * 5,
            out_specs=vmem,
            cost_estimate=cost,
        )(x_t, w1t, w2t, wht, b_packed)

    mean = out[:out_dim, :B].T
    log_std = out[out_dim:2 * out_dim, :B].T
    return mean, log_std


# -----------------------------------------------------------------------------
# One-time parameter preparation (transpose / pad / fuse / cast)
# -----------------------------------------------------------------------------
def prepare_params(p, input_dim, output_dim, hidden_size):
    """Pre-transpose weights to (out, in), fuse the two heads, pack biases +
    clamp bounds, pad to TPU-friendly sizes, cast weights to bf16."""
    L = _round_up(max(hidden_size, LANE), LANE)          # padded hidden width
    HO = _round_up(max(2 * output_dim, 8), 8)            # padded head rows
    assert HO <= L, "2*output_dim must not exceed padded hidden width"

    w1t = jnp.zeros((L, input_dim), jnp.float32).at[:hidden_size, :].set(p["w1"].T)
    w2t = jnp.zeros((L, L), jnp.float32).at[:hidden_size, :hidden_size].set(p["w2"].T)
    wht = jnp.zeros((HO, L), jnp.float32)
    wht = wht.at[:output_dim, :hidden_size].set(p["wm"].T)
    wht = wht.at[output_dim:2 * output_dim, :hidden_size].set(p["ws"].T)

    b = jnp.zeros((L, 8), jnp.float32)
    b = b.at[:hidden_size, 0].set(p["b1"].reshape(-1))
    b = b.at[:hidden_size, 1].set(p["b2"].reshape(-1))
    b = b.at[:output_dim, 2].set(p["bm"].reshape(-1))
    b = b.at[output_dim:2 * output_dim, 2].set(p["bs"].reshape(-1))
    lo = jnp.full((HO,), LOG_SIG_MIN, jnp.float32).at[:output_dim].set(-jnp.inf)
    hi = jnp.full((HO,), LOG_SIG_MAX, jnp.float32).at[:output_dim].set(jnp.inf)
    b = b.at[:HO, 3].set(lo)
    b = b.at[:HO, 4].set(hi)

    return dict(w1t=w1t.astype(jnp.bfloat16), w2t=w2t.astype(jnp.bfloat16),
                wht=wht.astype(jnp.bfloat16), b=b)


# -----------------------------------------------------------------------------
# Deterministic synthetic init (PyTorch-Linear-like fan-in scaling), (in,out) layout
# -----------------------------------------------------------------------------
def init_params(key, input_dim, output_dim, hidden_size):
    ks = jax.random.split(key, 8)

    def lin(kw, kb, fan_in, fan_out):
        bound = 1.0 / (fan_in ** 0.5)
        w = jax.random.uniform(kw, (fan_in, fan_out), jnp.float32, -bound, bound)
        b = jax.random.uniform(kb, (fan_out,), jnp.float32, -bound, bound)
        return w, b

    w1, b1 = lin(ks[0], ks[1], input_dim, hidden_size)
    w2, b2 = lin(ks[2], ks[3], hidden_size, hidden_size)
    wm, bm = lin(ks[4], ks[5], hidden_size, output_dim)
    ws, bs = lin(ks[6], ks[7], hidden_size, output_dim)
    return dict(w1=w1, b1=b1, w2=w2, b2=b2, wm=wm, bm=bm, ws=ws, bs=bs)


# -----------------------------------------------------------------------------
# References
# -----------------------------------------------------------------------------
def reference_forward(state, p):
    """Pure-f32 reference matching the PyTorch forward()."""
    h1 = jnp.maximum(state @ p["w1"] + p["b1"][None, :], 0.0)
    h2 = jnp.maximum(h1 @ p["w2"] + p["b2"][None, :], 0.0)
    mean = h2 @ p["wm"] + p["bm"][None, :]
    log_std = jnp.clip(h2 @ p["ws"] + p["bs"][None, :], LOG_SIG_MIN, LOG_SIG_MAX)
    return mean, log_std


def reference_forward_bf16(state, p):
    """Reference with the same bf16-operand / f32-accumulate math as the kernel."""
    def dot(a, w):
        return jnp.dot(a.astype(jnp.bfloat16), w.astype(jnp.bfloat16),
                       preferred_element_type=jnp.float32)
    h1 = jnp.maximum(dot(state, p["w1"]) + p["b1"][None, :], 0.0)
    h2 = jnp.maximum(dot(h1, p["w2"]) + p["b2"][None, :], 0.0)
    mean = dot(h2, p["wm"]) + p["bm"][None, :]
    log_std = jnp.clip(dot(h2, p["ws"]) + p["bs"][None, :], LOG_SIG_MIN, LOG_SIG_MAX)
    return mean, log_std


if __name__ == "__main__":
    # small shapes consistent with the module: batch=8, input_dim=16, hidden=32, output_dim=4
    B, INPUT_DIM, OUTPUT_DIM, HIDDEN = 8, 16, 4, 32

    key = jax.random.PRNGKey(0)
    k_state, k_params, k_big = jax.random.split(key, 3)
    state = jax.random.normal(k_state, (B, INPUT_DIM), jnp.float32)
    params = init_params(k_params, INPUT_DIM, OUTPUT_DIM, HIDDEN)
    prep = prepare_params(params, INPUT_DIM, OUTPUT_DIM, HIDDEN)

    fwd = jax.jit(functools.partial(soft_actor_net_forward, out_dim=OUTPUT_DIM))

    # --- tiny-batch (grid-less) path ---
    mean, log_std = jax.block_until_ready(
        fwd(state, prep["w1t"], prep["w2t"], prep["wht"], prep["b"]))

    ref_mean, ref_log_std = reference_forward(state, params)
    bf_mean, bf_log_std = reference_forward_bf16(state, params)

    assert mean.shape == (B, OUTPUT_DIM) and log_std.shape == (B, OUTPUT_DIM)
    # tight vs. a reference that uses the same bf16-weight / f32-accumulate math
    assert jnp.allclose(mean, bf_mean, atol=2e-3, rtol=2e-3)
    assert jnp.allclose(log_std, bf_log_std, atol=2e-3, rtol=2e-3)
    # loose vs. the pure-f32 PyTorch-equivalent reference (bf16 weight rounding)
    assert jnp.allclose(mean, ref_mean, atol=5e-2, rtol=5e-2)
    assert jnp.allclose(log_std, ref_log_std, atol=5e-2, rtol=5e-2)

    # --- large-batch (parallel batch grid) path: non-multiple B exercises the
    #     pad-to-tile + even-step logic ---
    BIG = 5000
    big_state = jax.random.normal(k_big, (BIG, INPUT_DIM), jnp.float32)
    big_mean, big_log_std = jax.block_until_ready(
        fwd(big_state, prep["w1t"], prep["w2t"], prep["wht"], prep["b"]))
    big_bf_mean, big_bf_log_std = reference_forward_bf16(big_state, params)
    assert big_mean.shape == (BIG, OUTPUT_DIM)
    assert jnp.allclose(big_mean, big_bf_mean, atol=2e-3, rtol=2e-3)
    assert jnp.allclose(big_log_std, big_bf_log_std, atol=2e-3, rtol=2e-3)

    print("KERNEL_OK")
</pallas_src>

<mosaic_0001>
module attributes {stable_mosaic.version = 11 : i64} {
  func.func @sac_actor_kernel(%arg0: memref<16x128xbf16, #tpu.memory_space<vmem>>, %arg1: memref<128x16xbf16, #tpu.memory_space<vmem>>, %arg2: memref<128x128xbf16, #tpu.memory_space<vmem>>, %arg3: memref<8x128xbf16, #tpu.memory_space<vmem>>, %arg4: memref<128x8xf32, #tpu.memory_space<vmem>>, %arg5: memref<8x128xf32, #tpu.memory_space<vmem>>) attributes {dimension_semantics = [], scalar_prefetch = 0 : i64, scratch_operands = 0 : i64, tpu.core_type = #tpu.core_type<tc>} {
    %c0 = arith.constant 0 : index
    %c0_0 = arith.constant 0 : index
    %0 = vector.load %arg4[%c0, %c0_0] : memref<128x8xf32, #tpu.memory_space<vmem>>, vector<128x8xf32>
    %1 = vector.extract_strided_slice %0 {offsets = [0, 0], sizes = [128, 1], strides = [1, 1]} : vector<128x8xf32> to vector<128x1xf32>
    %2 = vector.extract_strided_slice %0 {offsets = [0, 1], sizes = [128, 1], strides = [1, 1]} : vector<128x8xf32> to vector<128x1xf32>
    %3 = vector.extract_strided_slice %0 {offsets = [0, 2], sizes = [8, 1], strides = [1, 1]} : vector<128x8xf32> to vector<8x1xf32>
    %4 = vector.extract_strided_slice %0 {offsets = [0, 3], sizes = [8, 1], strides = [1, 1]} : vector<128x8xf32> to vector<8x1xf32>
    %5 = vector.extract_strided_slice %0 {offsets = [0, 4], sizes = [8, 1], strides = [1, 1]} : vector<128x8xf32> to vector<8x1xf32>
    %c0_1 = arith.constant 0 : index
    %c0_2 = arith.constant 0 : index
    %6 = vector.load %arg0[%c0_1, %c0_2] : memref<16x128xbf16, #tpu.memory_space<vmem>>, vector<16x128xbf16>
    %c0_3 = arith.constant 0 : index
    %c0_4 = arith.constant 0 : index
    %7 = vector.load %arg1[%c0_3, %c0_4] : memref<128x16xbf16, #tpu.memory_space<vmem>>, vector<128x16xbf16>
    %cst = arith.constant dense<0.000000e+00> : vector<128x128xf32>
    %8 = tpu.matmul %7, %6, %cst {dimension_numbers = #tpu.dot_dimension_numbers<[1], [0], [0], [1], [0, 0, 1, 1], [], []>} : vector<128x16xbf16>, vector<16x128xbf16>, vector<128x128xf32> -> vector<128x128xf32>
    %9 = vector.broadcast %1 : vector<128x1xf32> to vector<128x128xf32>
    %10 = arith.addf %8, %9 : vector<128x128xf32>
    %cst_5 = arith.constant 0.000000e+00 : f32
    %11 = vector.broadcast %cst_5 : f32 to vector<128x128xf32>
    %12 = arith.maximumf %10, %11 : vector<128x128xf32>
    %c0_6 = arith.constant 0 : index
    %c0_7 = arith.constant 0 : index
    %13 = vector.load %arg2[%c0_6, %c0_7] : memref<128x128xbf16, #tpu.memory_space<vmem>>, vector<128x128xbf16>
    %14 = arith.truncf %12 : vector<128x128xf32> to vector<128x128xbf16>
    %cst_8 = arith.constant dense<0.000000e+00> : vector<128x128xf32>
    %15 = tpu.matmul %13, %14, %cst_8 {dimension_numbers = #tpu.dot_dimension_numbers<[1], [0], [0], [1], [0, 0, 1, 1], [], []>} : vector<128x128xbf16>, vector<128x128xbf16>, vector<128x128xf32> -> vector<128x128xf32>
    %16 = vector.broadcast %2 : vector<128x1xf32> to vector<128x128xf32>
    %17 = arith.addf %15, %16 : vector<128x128xf32>
    %cst_9 = arith.constant 0.000000e+00 : f32
    %18 = vector.broadcast %cst_9 : f32 to vector<128x128xf32>
    %19 = arith.maximumf %17, %18 : vector<128x128xf32>
    %c0_10 = arith.constant 0 : index
    %c0_11 = arith.constant 0 : index
    %20 = vector.load %arg3[%c0_10, %c0_11] : memref<8x128xbf16, #tpu.memory_space<vmem>>, vector<8x128xbf16>
    %21 = arith.truncf %19 : vector<128x128xf32> to vector<128x128xbf16>
    %cst_12 = arith.constant dense<0.000000e+00> : vector<8x128xf32>
    %22 = tpu.matmul %20, %21, %cst_12 {dimension_numbers = #tpu.dot_dimension_numbers<[1], [0], [0], [1], [0, 0, 1, 1], [], []>} : vector<8x128xbf16>, vector<128x128xbf16>, vector<8x128xf32> -> vector<8x128xf32>
    %23 = vector.broadcast %3 : vector<8x1xf32> to vector<8x128xf32>
    %24 = arith.addf %22, %23 : vector<8x128xf32>
    %25 = vector.broadcast %4 : vector<8x1xf32> to vector<8x128xf32>
    %26 = arith.maximumf %24, %25 : vector<8x128xf32>
    %27 = vector.broadcast %5 : vector<8x1xf32> to vector<8x128xf32>
    %28 = arith.minimumf %26, %27 : vector<8x128xf32>
    %c0_13 = arith.constant 0 : index
    %c0_14 = arith.constant 0 : index
    %29 = vector.load %arg5[%c0_13, %c0_14] : memref<8x128xf32, #tpu.memory_space<vmem>>, vector<8x128xf32>
    tpu.vector_store %arg5[%c0_13, %c0_14], %28 {strides = array<i32>} : memref<8x128xf32, #tpu.memory_space<vmem>>, vector<8x128xf32>,
    return
  }
}

</mosaic_0001>

<llo_original>
// kernel: soft_actor_net_forward.1
$region0: #{soft_actor_net_forward.1}
  #allocation0 [shape = 'u32[]', space=smem, size = 0x4, offset = 0x4, fixed_abs, tag = 'smem constant byte address 0x4 - core index']
  #allocation1 [shape = 'u32[144,128]{1,0:T(1,128)}', space=vmem, size = 0x12000, scoped, tag = 'internal scratch']
  %s0 = inlined_call_operand.vmem [shape: bf16[16,128], index: 0, kind: input, shape index: {}]
  %s1 = inlined_call_operand.vmem [shape: bf16[128,16], index: 1, kind: input, shape index: {}]
  %s2 = inlined_call_operand.vmem [shape: bf16[128,128], index: 2, kind: input, shape index: {}]
  %s3 = inlined_call_operand.vmem [shape: bf16[8,128], index: 3, kind: input, shape index: {}]
  %s4 = inlined_call_operand.vmem [shape: f32[128,8], index: 4, kind: input, shape index: {}]
  %s5 = inlined_call_operand.vmem [shape: f32[8,128], index: 5, kind: output, shape index: {}]
  %s6 = sld [smem:[#allocation0]]
  $region30: #{soft_actor_net_forward.1} parent=0
    _
  %s8 = ssub.s32 1, %s6
  %s9 = scalar_select 0, %s8, %s6
  // Predicated region
  $region2: #{soft_actor_net_forward.1} parent=0 // pred_check
    _
  $region3: #{soft_actor_net_forward.1} parent=0 // pred_check_branch
    %11 = sbr.rel (0) target = $region5
  $region4: #{soft_actor_net_forward.1} parent=0 // pred_region
    _
  $region5: #{soft_actor_net_forward.1} parent=0 // pred_fallthru
    _
  // Predicated region
  $region6: #{soft_actor_net_forward.1} parent=0 // pred_check
    _
  $region7: #{soft_actor_net_forward.1} parent=0 // pred_check_branch
    %13 = sbr.rel (0) target = $region9
  $region8: #{soft_actor_net_forward.1} parent=0 // pred_region
    _
  $region9: #{soft_actor_net_forward.1} parent=0 // pred_fallthru
    _
  // Predicated region
  $region10: #{soft_actor_net_forward.1} parent=0 // pred_check
    _
  $region11: #{soft_actor_net_forward.1} parent=0 // pred_check_branch
    %15 = sbr.rel (0) target = $region13
  $region12: #{soft_actor_net_forward.1} parent=0 // pred_region
    _
  $region13: #{soft_actor_net_forward.1} parent=0 // pred_fallthru
    _
  // Predicated region
  $region14: #{soft_actor_net_forward.1} parent=0 // pred_check
    _
  $region15: #{soft_actor_net_forward.1} parent=0 // pred_check_branch
    %17 = sbr.rel (0) target = $region17
  $region16: #{soft_actor_net_forward.1} parent=0 // pred_region
    _
  $region17: #{soft_actor_net_forward.1} parent=0 // pred_fallthru
    _
  // Predicated region
  $region18: #{soft_actor_net_forward.1} parent=0 // pred_check
    _
  $region19: #{soft_actor_net_forward.1} parent=0 // pred_check_branch
    %19 = sbr.rel (0) target = $region21
  $region20: #{soft_actor_net_forward.1} parent=0 // pred_region
    _
  $region21: #{soft_actor_net_forward.1} parent=0 // pred_fallthru
    _
  %v21 = vld [vmem:[%s4] sm:$0xff]
  %v22 = vld [vmem:[%s4 + $0x8] sm:$0xff]
  %v23 = vld [vmem:[%s4 + $0x10] sm:$0xff]
  %v24 = vld [vmem:[%s4 + $0x18] sm:$0xff]
  %v25 = vld [vmem:[%s4 + $0x20] sm:$0xff]
  %v26 = vld [vmem:[%s4 + $0x28] sm:$0xff]
  %v27 = vld [vmem:[%s4 + $0x30] sm:$0xff]
  %v28 = vld [vmem:[%s4 + $0x38] sm:$0xff]
  %v29 = vld [vmem:[%s4 + $0x40] sm:$0xff]
  %v30 = vld [vmem:[%s4 + $0x48] sm:$0xff]
  %v31 = vld [vmem:[%s4 + $0x50] sm:$0xff]
  %v32 = vld [vmem:[%s4 + $0x58] sm:$0xff]
  %v33 = vld [vmem:[%s4 + $0x60] sm:$0xff]
  %v34 = vld [vmem:[%s4 + $0x68] sm:$0xff]
  %v35 = vld [vmem:[%s4 + $0x70] sm:$0xff]
  %v36 = vld [vmem:[%s4 + $0x78] sm:$0xff]
  %v37 = vld [vmem:[%s0] sm:$0xf]
  %v38 = vld [vmem:[%s0 + $0x4] sm:$0xf]
  %v39 = vld [vmem:[%s1] sm:$0xf]
  %v40 = vld [vmem:[%s1 + $0x4] sm:$0xf]
  %v41 = vld [vmem:[%s1 + $0x8] sm:$0xf]
  %v42 = vld [vmem:[%s1 + $0xc] sm:$0xf]
  %v43 = vld [vmem:[%s1 + $0x10] sm:$0xf]
  %v44 = vld [vmem:[%s1 + $0x14] sm:$0xf]
  %v45 = vld [vmem:[%s1 + $0x18] sm:$0xf]
  %v46 = vld [vmem:[%s1 + $0x1c] sm:$0xf]
  %v47 = vld [vmem:[%s1 + $0x20] sm:$0xf]
  %v48 = vld [vmem:[%s1 + $0x24] sm:$0xf]
  %v49 = vld [vmem:[%s1 + $0x28] sm:$0xf]
  %v50 = vld [vmem:[%s1 + $0x2c] sm:$0xf]
  %v51 = vld [vmem:[%s1 + $0x30] sm:$0xf]
  %v52 = vld [vmem:[%s1 + $0x34] sm:$0xf]
  %v53 = vld [vmem:[%s1 + $0x38] sm:$0xf]
  %v54 = vld [vmem:[%s1 + $0x3c] sm:$0xf]
  %56 = vset.pattern.permute.xlu0 0
  %57 = vperm.xlu0 %56, %v21
  %v58 = vpop.permute.xlu0 %57
  %61 = vset.pattern.permute.xlu0 0
  %62 = vperm.xlu0 %61, %v22
  %v63 = vpop.permute.xlu0 %62
  %66 = vset.pattern.permute.xlu0 0
  %67 = vperm.xlu0 %66, %v23
  %v68 = vpop.permute.xlu0 %67
  %71 = vset.pattern.permute.xlu0 0
  %72 = vperm.xlu0 %71, %v24
  %v73 = vpop.permute.xlu0 %72
  %76 = vset.pattern.permute.xlu0 0
  %77 = vperm.xlu0 %76, %v25
  %v78 = vpop.permute.xlu0 %77
  %81 = vset.pattern.permute.xlu0 0
  %82 = vperm.xlu0 %81, %v26
  %v83 = vpop.permute.xlu0 %82
  %86 = vset.pattern.permute.xlu0 0
  %87 = vperm.xlu0 %86, %v27
  %v88 = vpop.permute.xlu0 %87
  %91 = vset.pattern.permute.xlu0 0
  %92 = vperm.xlu0 %91, %v28
  %v93 = vpop.permute.xlu0 %92
  %96 = vset.pattern.permute.xlu0 0
  %97 = vperm.xlu0 %96, %v29
  %v98 = vpop.permute.xlu0 %97
  %101 = vset.pattern.permute.xlu0 0
  %102 = vperm.xlu0 %101, %v30
  %v103 = vpop.permute.xlu0 %102
  %106 = vset.pattern.permute.xlu0 0
  %107 = vperm.xlu0 %106, %v31
  %v108 = vpop.permute.xlu0 %107
  %111 = vset.pattern.permute.xlu0 0
  %112 = vperm.xlu0 %111, %v32
  %v113 = vpop.permute.xlu0 %112
  %116 = vset.pattern.permute.xlu0 0
  %117 = vperm.xlu0 %116, %v33
  %v118 = vpop.permute.xlu0 %117
  %121 = vset.pattern.permute.xlu0 0
  %122 = vperm.xlu0 %121, %v34
  %v123 = vpop.permute.xlu0 %122
  %126 = vset.pattern.permute.xlu0 0
  %127 = vperm.xlu0 %126, %v35
  %v128 = vpop.permute.xlu0 %127
  %131 = vset.pattern.permute.xlu0 0
  %132 = vperm.xlu0 %131, %v36
  %v133 = vpop.permute.xlu0 %132
  %v151 = vunpack.c.l.b16 %v39
  %v152 = vunpack.c.l.b16 %v40
  %v153 = vunpack.c.l.b16 %v41
  %v154 = vunpack.c.l.b16 %v42
  %v155 = vunpack.c.l.b16 %v43
  %v156 = vunpack.c.l.b16 %v44
  %v157 = vunpack.c.l.b16 %v45
  %v158 = vunpack.c.l.b16 %v46
  %v159 = vunpack.c.l.b16 %v47
  %v160 = vunpack.c.l.b16 %v48
  %v161 = vunpack.c.l.b16 %v49
  %v162 = vunpack.c.l.b16 %v50
  %v163 = vunpack.c.l.b16 %v51
  %v164 = vunpack.c.l.b16 %v52
  %v165 = vunpack.c.l.b16 %v53
  %v166 = vunpack.c.l.b16 %v54
  %v167 = vpack.c.b16 %v152, %v151
  %v168 = vpack.c.b16 %v154, %v153
  %v169 = vpack.c.b16 %v156, %v155
  %v170 = vpack.c.b16 %v158, %v157
  %v171 = vpack.c.b16 %v160, %v159
  %v172 = vpack.c.b16 %v162, %v161
  %v173 = vpack.c.b16 %v164, %v163
  %v174 = vpack.c.b16 %v166, %v165
  %v177 = vunpack.c.l.b16 %v37
  %v178 = vunpack.c.l.b16 %v38
  %v179 = vpack.c.b16 %v178, %v177
  %vm181 = vcmask 130048
  %v183 = vsel %vm181, %v167, 0
  %v186 = vsel %vm181, %v168, 0
  %v189 = vsel %vm181, %v169, 0
  %v192 = vsel %vm181, %v170, 0
  %v195 = vsel %vm181, %v171, 0
  %v198 = vsel %vm181, %v172, 0
  %v201 = vsel %vm181, %v173, 0
  %v204 = vsel %vm181, %v174, 0
  %206 = vmatprep.subr.bf16.mxu0 0
  %207 = vmatpush1.bf16.msra.mxu0 %v179
  %208 = vmatprep.subr.bf16.mxu0 0
  %209 = vmatpush1.bf16.msra.mxu0 0
  %210 = vmatprep.subr.bf16.mxu0 0
  %211 = vmatpush1.bf16.msra.mxu0 0
  %212 = vmatprep.subr.bf16.mxu0 0
  %213 = vmatpush1.bf16.msra.mxu0 0
  %214 = vmatprep.subr.bf16.mxu0 0
  %215 = vmatpush1.bf16.msra.mxu0 0
  %216 = vmatprep.subr.bf16.mxu0 0
  %217 = vmatpush1.bf16.msra.mxu0 0
  %218 = vmatprep.subr.bf16.mxu0 0
  %219 = vmatpush1.bf16.msra.mxu0 0
  %220 = vmatprep.subr.bf16.mxu0 0
  %221 = vmatpush1.bf16.msra.mxu0 0
  %222 = vmatprep.subr.bf16.mxu0 0
  %223 = vmatpush1.bf16.msra.mxu0 0
  %224 = vmatprep.subr.bf16.mxu0 0
  %225 = vmatpush1.bf16.msra.mxu0 0
  %226 = vmatprep.subr.bf16.mxu0 0
  %227 = vmatpush1.bf16.msra.mxu0 0
  %228 = vmatprep.subr.bf16.mxu0 0
  %229 = vmatpush1.bf16.msra.mxu0 0
  %230 = vmatprep.subr.bf16.mxu0 0
  %231 = vmatpush1.bf16.msra.mxu0 0
  %232 = vmatprep.subr.bf16.mxu0 0
  %233 = vmatpush1.bf16.msra.mxu0 0
  %234 = vmatprep.subr.bf16.mxu0 0
  %235 = vmatpush1.bf16.msra.mxu0 0
  %236 = vmatprep.subr.bf16.mxu0 0
  %237 = vmatpush1.bf16.msra.mxu0 0
  %238 = vmatprep.mubr.bf16.mxu0 0
  %239 = vmatmul.mubr.bf16.gmra.mrb[0].mxu0 %v183
  %v240 = vpop.f32.mrb[0].mxu0
  %v241 = vadd.f32 %v58, %v240
  %v242 = vpop.f32.mrb[0].mxu0
  %v243 = vpop.f32.mrb[0].mxu0
  %v244 = vadd.f32 %v63, %v243
  %v245 = vpop.f32.mrb[0].mxu0
  %246 = vmatprep.mubr.bf16.mxu0 0
  %247 = vmatmul.mubr.bf16.gmra.mrb[0].mxu0 %v186
  %v248 = vpop.f32.mrb[0].mxu0
  %v249 = vadd.f32 %v68, %v248
  %v250 = vpop.f32.mrb[0].mxu0
  %v251 = vpop.f32.mrb[0].mxu0
  %v252 = vadd.f32 %v73, %v251
  %v253 = vpop.f32.mrb[0].mxu0
  %254 = vmatprep.mubr.bf16.mxu0 0
  %255 = vmatmul.mubr.bf16.gmra.mrb[0].mxu0 %v189
  %v256 = vpop.f32.mrb[0].mxu0
  %v257 = vadd.f32 %v78, %v256
  %v258 = vpop.f32.mrb[0].mxu0
  %v259 = vpop.f32.mrb[0].mxu0
  %v260 = vadd.f32 %v83, %v259
  %v261 = vpop.f32.mrb[0].mxu0
  %262 = vmatprep.mubr.bf16.mxu0 0
  %263 = vmatmul.mubr.bf16.gmra.mrb[0].mxu0 %v192
  %v264 = vpop.f32.mrb[0].mxu0
  %v265 = vadd.f32 %v88, %v264
  %v266 = vpop.f32.mrb[0].mxu0
  %v267 = vpop.f32.mrb[0].mxu0
  %v268 = vadd.f32 %v93, %v267
  %v269 = vpop.f32.mrb[0].mxu0
  %270 = vmatprep.mubr.bf16.mxu0 0
  %271 = vmatmul.mubr.bf16.gmra.mrb[0].mxu0 %v195
  %v272 = vpop.f32.mrb[0].mxu0
  %v273 = vadd.f32 %v98, %v272
  %v274 = vpop.f32.mrb[0].mxu0
  %v275 = vpop.f32.mrb[0].mxu0
  %v276 = vadd.f32 %v103, %v275
  %v277 = vpop.f32.mrb[0].mxu0
  %278 = vmatprep.mubr.bf16.mxu0 0
  %279 = vmatmul.mubr.bf16.gmra.mrb[0].mxu0 %v198
  %v280 = vpop.f32.mrb[0].mxu0
  %v281 = vadd.f32 %v108, %v280
  %v282 = vpop.f32.mrb[0].mxu0
  %v283 = vpop.f32.mrb[0].mxu0
  %v284 = vadd.f32 %v113, %v283
  %v285 = vpop.f32.mrb[0].mxu0
  %286 = vmatprep.mubr.bf16.mxu0 0
  %287 = vmatmul.mubr.bf16.gmra.mrb[0].mxu0 %v201
  %v288 = vpop.f32.mrb[0].mxu0
  %v289 = vadd.f32 %v118, %v288
  %v290 = vpop.f32.mrb[0].mxu0
  %v291 = vpop.f32.mrb[0].mxu0
  %v292 = vadd.f32 %v123, %v291
  %v293 = vpop.f32.mrb[0].mxu0
  %294 = vmatprep.mubr.bf16.mxu0 0
  %295 = vmatmul.mubr.bf16.gmra.mrb[0].mxu0 %v204
  %v296 = vpop.f32.mrb[0].mxu0
  %v297 = vadd.f32 %v128, %v296
  %v298 = vpop.f32.mrb[0].mxu0
  %v299 = vpop.f32.mrb[0].mxu0
  %v300 = vadd.f32 %v133, %v299
  %v301 = vpop.f32.mrb[0].mxu0
  %302 = vdwg.mxu0
  %v303 = vmax.f32 %v241, 0.0
  %v304 = vmax.f32 %v244, 0.0
  %v305 = vmax.f32 %v249, 0.0
  %v306 = vmax.f32 %v252, 0.0
  %v307 = vmax.f32 %v257, 0.0
  %v308 = vmax.f32 %v260, 0.0
  %v309 = vmax.f32 %v265, 0.0
  %v310 = vmax.f32 %v268, 0.0
  %v311 = vmax.f32 %v273, 0.0
  %v312 = vmax.f32 %v276, 0.0
  %v313 = vmax.f32 %v281, 0.0
  %v314 = vmax.f32 %v284, 0.0
  %v315 = vmax.f32 %v289, 0.0
  %v316 = vmax.f32 %v292, 0.0
  %v317 = vmax.f32 %v297, 0.0
  %v318 = vmax.f32 %v300, 0.0
  %v319 = vld [vmem:[%s2] sm:$0xf]
  %v320 = vld [vmem:[%s2 + $0x4] sm:$0xf]
  %v321 = vld [vmem:[%s2 + $0x8] sm:$0xf]
  %v322 = vld [vmem:[%s2 + $0xc] sm:$0xf]
  %v323 = vld [vmem:[%s2 + $0x10] sm:$0xf]
  %v324 = vld [vmem:[%s2 + $0x14] sm:$0xf]
  %v325 = vld [vmem:[%s2 + $0x18] sm:$0xf]
  %v326 = vld [vmem:[%s2 + $0x1c] sm:$0xf]
  %v327 = vld [vmem:[%s2 + $0x20] sm:$0xf]
  %v328 = vld [vmem:[%s2 + $0x24] sm:$0xf]
  %v329 = vld [vmem:[%s2 + $0x28] sm:$0xf]
  %v330 = vld [vmem:[%s2 + $0x2c] sm:$0xf]
  %v331 = vld [vmem:[%s2 + $0x30] sm:$0xf]
  %v332 = vld [vmem:[%s2 + $0x34] sm:$0xf]
  %v333 = vld [vmem:[%s2 + $0x38] sm:$0xf]
  %v334 = vld [vmem:[%s2 + $0x3c] sm:$0xf]
  %v335 = vpack.c.bf16 %v304, %v303
  %v336 = vpack.c.bf16 %v306, %v305
  %v337 = vpack.c.bf16 %v308, %v307
  %v338 = vpack.c.bf16 %v310, %v309
  %v339 = vpack.c.bf16 %v312, %v311
  %v340 = vpack.c.bf16 %v314, %v313
  %v341 = vpack.c.bf16 %v316, %v315
  %v342 = vpack.c.bf16 %v318, %v317
  %343 = vset.pattern.permute.xlu0 1
  %344 = vperm.xlu0 %343, %v21
  %v345 = vpop.permute.xlu0 %344
  %347 = vset.pattern.permute.xlu0 1
  %348 = vperm.xlu0 %347, %v22
  %v349 = vpop.permute.xlu0 %348
  %351 = vset.pattern.permute.xlu0 1
  %352 = vperm.xlu0 %351, %v23
  %v353 = vpop.permute.xlu0 %352
  %355 = vset.pattern.permute.xlu0 1
  %356 = vperm.xlu0 %355, %v24
  %v357 = vpop.permute.xlu0 %356
  %359 = vset.pattern.permute.xlu0 1
  %360 = vperm.xlu0 %359, %v25
  %v361 = vpop.permute.xlu0 %360
  %363 = vset.pattern.permute.xlu0 1
  %364 = vperm.xlu0 %363, %v26
  %v365 = vpop.permute.xlu0 %364
  %367 = vset.pattern.permute.xlu0 1
  %368 = vperm.xlu0 %367, %v27
  %v369 = vpop.permute.xlu0 %368
  %371 = vset.pattern.permute.xlu0 1
  %372 = vperm.xlu0 %371, %v28
  %v373 = vpop.permute.xlu0 %372
  %375 = vset.pattern.permute.xlu0 1
  %376 = vperm.xlu0 %375, %v29
  %v377 = vpop.permute.xlu0 %376
  %379 = vset.pattern.permute.xlu0 1
  %380 = vperm.xlu0 %379, %v30
  %v381 = vpop.permute.xlu0 %380
  %383 = vset.pattern.permute.xlu0 1
  %384 = vperm.xlu0 %383, %v31
  %v385 = vpop.permute.xlu0 %384
  %387 = vset.pattern.permute.xlu0 1
  %388 = vperm.xlu0 %387, %v32
  %v389 = vpop.permute.xlu0 %388
  %391 = vset.pattern.permute.xlu0 1
  %392 = vperm.xlu0 %391, %v33
  %v393 = vpop.permute.xlu0 %392
  %395 = vset.pattern.permute.xlu0 1
  %396 = vperm.xlu0 %395, %v34
  %v397 = vpop.permute.xlu0 %396
  %399 = vset.pattern.permute.xlu0 1
  %400 = vperm.xlu0 %399, %v35
  %v401 = vpop.permute.xlu0 %400
  %403 = vset.pattern.permute.xlu0 1
  %404 = vperm.xlu0 %403, %v36
  %v405 = vpop.permute.xlu0 %404
  %v423 = vunpack.c.l.b16 %v319
  %v424 = vunpack.c.l.b16 %v320
  %v425 = vunpack.c.l.b16 %v321
  %v426 = vunpack.c.l.b16 %v322
  %v427 = vunpack.c.l.b16 %v323
  %v428 = vunpack.c.l.b16 %v324
  %v429 = vunpack.c.l.b16 %v325
  %v430 = vunpack.c.l.b16 %v326
  %v431 = vunpack.c.l.b16 %v327
  %v432 = vunpack.c.l.b16 %v328
  %v433 = vunpack.c.l.b16 %v329
  %v434 = vunpack.c.l.b16 %v330
  %v435 = vunpack.c.l.b16 %v331
  %v436 = vunpack.c.l.b16 %v332
  %v437 = vunpack.c.l.b16 %v333
  %v438 = vunpack.c.l.b16 %v334
  %v439 = vpack.c.b16 %v424, %v423
  %v440 = vpack.c.b16 %v426, %v425
  %v441 = vpack.c.b16 %v428, %v427
  %v442 = vpack.c.b16 %v430, %v429
  %v443 = vpack.c.b16 %v432, %v431
  %v444 = vpack.c.b16 %v434, %v433
  %v445 = vpack.c.b16 %v436, %v435
  %v446 = vpack.c.b16 %v438, %v437
  %455 = vmatprep.subr.bf16.mxu0 0
  %456 = vmatpush1.bf16.msra.mxu0 %v335
  %457 = vmatprep.subr.bf16.mxu0 0
  %458 = vmatpush1.bf16.msra.mxu0 %v336
  %459 = vmatprep.subr.bf16.mxu0 0
  %460 = vmatpush1.bf16.msra.mxu0 %v337
  %461 = vmatprep.subr.bf16.mxu0 0
  %462 = vmatpush1.bf16.msra.mxu0 %v338
  %463 = vmatprep.subr.bf16.mxu0 0
  %464 = vmatpush1.bf16.msra.mxu0 %v339
  %465 = vmatprep.subr.bf16.mxu0 0
  %466 = vmatpush1.bf16.msra.mxu0 %v340
  %467 = vmatprep.subr.bf16.mxu0 0
  %468 = vmatpush1.bf16.msra.mxu0 %v341
  %469 = vmatprep.subr.bf16.mxu0 0
  %470 = vmatpush1.bf16.msra.mxu0 %v342
  %471 = vmatprep.subr.bf16.mxu0 0
  %472 = vmatpush1.bf16.msra.mxu0 0
  %473 = vmatprep.subr.bf16.mxu0 0
  %474 = vmatpush1.bf16.msra.mxu0 0
  %475 = vmatprep.subr.bf16.mxu0 0
  %476 = vmatpush1.bf16.msra.mxu0 0
  %477 = vmatprep.subr.bf16.mxu0 0
  %478 = vmatpush1.bf16.msra.mxu0 0
  %479 = vmatprep.subr.bf16.mxu0 0
  %480 = vmatpush1.bf16.msra.mxu0 0
  %481 = vmatprep.subr.bf16.mxu0 0
  %482 = vmatpush1.bf16.msra.mxu0 0
  %483 = vmatprep.subr.bf16.mxu0 0
  %484 = vmatpush1.bf16.msra.mxu0 0
  %485 = vmatprep.subr.bf16.mxu0 0
  %486 = vmatpush1.bf16.msra.mxu0 0
  %487 = vmatprep.mubr.bf16.mxu0 0
  %488 = vmatmul.mubr.bf16.gmra.mrb[0].mxu0 %v439
  %v489 = vpop.f32.mrb[0].mxu0
  %v490 = vadd.f32 %v345, %v489
  %v491 = vpop.f32.mrb[0].mxu0
  %v492 = vpop.f32.mrb[0].mxu0
  %v493 = vadd.f32 %v349, %v492
  %v494 = vpop.f32.mrb[0].mxu0
  %495 = vmatprep.mubr.bf16.mxu0 0
  %496 = vmatmul.mubr.bf16.gmra.mrb[0].mxu0 %v440
  %v497 = vpop.f32.mrb[0].mxu0
  %v498 = vadd.f32 %v353, %v497
  %v499 = vpop.f32.mrb[0].mxu0
  %v500 = vpop.f32.mrb[0].mxu0
  %v501 = vadd.f32 %v357, %v500
  %v502 = vpop.f32.mrb[0].mxu0
  %503 = vmatprep.mubr.bf16.mxu0 0
  %504 = vmatmul.mubr.bf16.gmra.mrb[0].mxu0 %v441
  %v505 = vpop.f32.mrb[0].mxu0
  %v506 = vadd.f32 %v361, %v505
  %v507 = vpop.f32.mrb[0].mxu0
  %v508 = vpop.f32.mrb[0].mxu0
  %v509 = vadd.f32 %v365, %v508
  %v510 = vpop.f32.mrb[0].mxu0
  %511 = vmatprep.mubr.bf16.mxu0 0
  %512 = vmatmul.mubr.bf16.gmra.mrb[0].mxu0 %v442
  %v513 = vpop.f32.mrb[0].mxu0
  %v514 = vadd.f32 %v369, %v513
  %v515 = vpop.f32.mrb[0].mxu0
  %v516 = vpop.f32.mrb[0].mxu0
  %v517 = vadd.f32 %v373, %v516
  %v518 = vpop.f32.mrb[0].mxu0
  %519 = vmatprep.mubr.bf16.mxu0 0
  %520 = vmatmul.mubr.bf16.gmra.mrb[0].mxu0 %v443
  %v521 = vpop.f32.mrb[0].mxu0
  %v522 = vadd.f32 %v377, %v521
  %v523 = vpop.f32.mrb[0].mxu0
  %v524 = vpop.f32.mrb[0].mxu0
  %v525 = vadd.f32 %v381, %v524
  %v526 = vpop.f32.mrb[0].mxu0
  %527 = vmatprep.mubr.bf16.mxu0 0
  %528 = vmatmul.mubr.bf16.gmra.mrb[0].mxu0 %v444
  %v529 = vpop.f32.mrb[0].mxu0
  %v530 = vadd.f32 %v385, %v529
  %v531 = vpop.f32.mrb[0].mxu0
  %v532 = vpop.f32.mrb[0].mxu0
  %v533 = vadd.f32 %v389, %v532
  %v534 = vpop.f32.mrb[0].mxu0
  %535 = vmatprep.mubr.bf16.mxu0 0
  %536 = vmatmul.mubr.bf16.gmra.mrb[0].mxu0 %v445
  %v537 = vpop.f32.mrb[0].mxu0
  %v538 = vadd.f32 %v393, %v537
  %v539 = vpop.f32.mrb[0].mxu0
  %v540 = vpop.f32.mrb[0].mxu0
  %v541 = vadd.f32 %v397, %v540
  %v542 = vpop.f32.mrb[0].mxu0
  %543 = vmatprep.mubr.bf16.mxu0 0
  %544 = vmatmul.mubr.bf16.gmra.mrb[0].mxu0 %v446
  %v545 = vpop.f32.mrb[0].mxu0
  %v546 = vadd.f32 %v401, %v545
  %v547 = vpop.f32.mrb[0].mxu0
  %v548 = vpop.f32.mrb[0].mxu0
  %v549 = vadd.f32 %v405, %v548
  %v550 = vpop.f32.mrb[0].mxu0
  %551 = vdwg.mxu0
  %v552 = vmax.f32 %v490, 0.0
  %v553 = vmax.f32 %v493, 0.0
  %v554 = vmax.f32 %v498, 0.0
  %v555 = vmax.f32 %v501, 0.0
  %v556 = vmax.f32 %v506, 0.0
  %v557 = vmax.f32 %v509, 0.0
  %v558 = vmax.f32 %v514, 0.0
  %v559 = vmax.f32 %v517, 0.0
  %v560 = vmax.f32 %v522, 0.0
  %v561 = vmax.f32 %v525, 0.0
  %v562 = vmax.f32 %v530, 0.0
  %v563 = vmax.f32 %v533, 0.0
  %v564 = vmax.f32 %v538, 0.0
  %v565 = vmax.f32 %v541, 0.0
  %v566 = vmax.f32 %v546, 0.0
  %v567 = vmax.f32 %v549, 0.0
  %v568 = vld [vmem:[%s3] sm:$0xf]
  %v569 = vpack.c.bf16 %v553, %v552
  %v570 = vpack.c.bf16 %v555, %v554
  %v571 = vpack.c.bf16 %v557, %v556
  %v572 = vpack.c.bf16 %v559, %v558
  %v573 = vpack.c.bf16 %v561, %v560
  %v574 = vpack.c.bf16 %v563, %v562
  %v575 = vpack.c.bf16 %v565, %v564
  %v576 = vpack.c.bf16 %v567, %v566
  %577 = vset.pattern.permute.xlu0 2
  %578 = vperm.xlu0 %577, %v21
  %v579 = vpop.permute.xlu0 %578
  %581 = vmatprep.subr.bf16.mxu0 0
  %582 = vmatpush1.bf16.msra.mxu0 %v569
  %583 = vmatprep.subr.bf16.mxu0 0
  %584 = vmatpush1.bf16.msra.mxu0 %v570
  %585 = vmatprep.subr.bf16.mxu0 0
  %586 = vmatpush1.bf16.msra.mxu0 %v571
  %587 = vmatprep.subr.bf16.mxu0 0
  %588 = vmatpush1.bf16.msra.mxu0 %v572
  %589 = vmatprep.subr.bf16.mxu0 0
  %590 = vmatpush1.bf16.msra.mxu0 %v573
  %591 = vmatprep.subr.bf16.mxu0 0
  %592 = vmatpush1.bf16.msra.mxu0 %v574
  %593 = vmatprep.subr.bf16.mxu0 0
  %594 = vmatpush1.bf16.msra.mxu0 %v575
  %595 = vmatprep.subr.bf16.mxu0 0
  %596 = vmatpush1.bf16.msra.mxu0 %v576
  %597 = vmatprep.subr.bf16.mxu0 0
  %598 = vmatpush1.bf16.msra.mxu0 0
  %599 = vmatprep.subr.bf16.mxu0 0
  %600 = vmatpush1.bf16.msra.mxu0 0
  %601 = vmatprep.subr.bf16.mxu0 0
  %602 = vmatpush1.bf16.msra.mxu0 0
  %603 = vmatprep.subr.bf16.mxu0 0
  %604 = vmatpush1.bf16.msra.mxu0 0
  %605 = vmatprep.subr.bf16.mxu0 0
  %606 = vmatpush1.bf16.msra.mxu0 0
  %607 = vmatprep.subr.bf16.mxu0 0
  %608 = vmatpush1.bf16.msra.mxu0 0
  %609 = vmatprep.subr.bf16.mxu0 0
  %610 = vmatpush1.bf16.msra.mxu0 0
  %611 = vmatprep.subr.bf16.mxu0 0
  %612 = vmatpush1.bf16.msra.mxu0 0
  %613 = vmatprep.mubr.bf16.mxu0 0
  %614 = vmatmul.mubr.bf16.gmra.mrb[0].mxu0 %v568
  %v615 = vpop.f32.mrb[0].mxu0
  %v616 = vadd.f32 %v579, %v615
  %v617 = vpop.f32.mrb[0].mxu0
  %v618 = vpop.f32.mrb[0].mxu0
  %v619 = vpop.f32.mrb[0].mxu0
  %620 = vdwg.mxu0
  %621 = vset.pattern.permute.xlu0 3
  %622 = vperm.xlu0 %621, %v21
  %v623 = vpop.permute.xlu0 %622
  %v625 = vmax.f32 %v616, %v623
  %626 = vset.pattern.permute.xlu0 4
  %627 = vperm.xlu0 %626, %v21
  %v628 = vpop.permute.xlu0 %627
  %v630 = vmin.f32 %v625, %v628
  %631 = vst [vmem:[%s5] sm:$0xff] %v630
  // Predicated region
  $region22: #{soft_actor_net_forward.1} parent=0 // pred_check
    _
  $region23: #{soft_actor_net_forward.1} parent=0 // pred_check_branch
    %633 = sbr.rel (0) target = $region25
  $region24: #{soft_actor_net_forward.1} parent=0 // pred_region
    _
  $region25: #{soft_actor_net_forward.1} parent=0 // pred_fallthru
    _
  // Predicated region
  $region26: #{soft_actor_net_forward.1} parent=0 // pred_check
    _
  $region27: #{soft_actor_net_forward.1} parent=0 // pred_check_branch
    %635 = sbr.rel (0) target = $region29
  $region28: #{soft_actor_net_forward.1} parent=0 // pred_region
    _
  $region29: #{soft_actor_net_forward.1} parent=0 // pred_fallthru
    _

</llo_original>
